<compile_context>
chip_gen: v7x
topology: tpu7x:2x2x1
jax: 0.10.0
libtpu: 0.0.40
codegen_flags: <defaults>
</compile_context>

<pallas_src>
import jax
import jax.numpy as jnp
from jax.experimental import pallas as pl
from jax.experimental.pallas import tpu as pltpu

_LANE = 128      # lane width (last dim)
_SUBLANE = 8     # sublane width (second-to-last dim)


def _round_up(x, m):
    return (x + m - 1) // m * m


def dqn_mlp_kernel(x_ref,
                   w1_ref, b1_ref,
                   w2_ref, b2_ref,
                   w3_ref, b3_ref,
                   w4_ref, b4_ref,
                   out_ref):
    """One batch tile of the 4-layer MLP.

    Matmul inputs are in the weights' dtype (bf16 for full-rate MXU on
    v6e/v7x); accumulation, bias-add and ReLU stay in f32. Weights are
    VMEM-resident across the batch grid (constant index_maps)."""
    cdt = w1_ref.dtype  # compute dtype for MXU inputs (bf16 or f32)

    # fc1 + relu
    h = jnp.dot(x_ref[...].astype(cdt), w1_ref[...],
                preferred_element_type=jnp.float32)
    h = jnp.maximum(h + b1_ref[...], 0.0)
    # fc2 + relu
    h = jnp.dot(h.astype(cdt), w2_ref[...],
                preferred_element_type=jnp.float32)
    h = jnp.maximum(h + b2_ref[...], 0.0)
    # fc3 + relu
    h = jnp.dot(h.astype(cdt), w3_ref[...],
                preferred_element_type=jnp.float32)
    h = jnp.maximum(h + b3_ref[...], 0.0)
    # fc4 (no activation), lane-dense (width-128) padded store
    h = jnp.dot(h.astype(cdt), w4_ref[...],
                preferred_element_type=jnp.float32)
    out_ref[...] = (h + b4_ref[...]).astype(out_ref.dtype)


def dqn_mlp_forward(x, params, *, compute_dtype=jnp.bfloat16, block_b=1024):
    """x: (B, in_features) f32. params: dict of W (in_dim,out_dim), b (1,out_dim).

    compute_dtype: dtype of the MXU inputs (bf16 recommended on v6e/v7x,
    f32 for bit-exact checks). Accumulation/bias/ReLU are always f32.
    """
    B, in_features = x.shape
    h1 = params["w1"].shape[1]          # 256
    h2 = params["w2"].shape[1]          # 128
    h3 = params["w3"].shape[1]          # 32
    num_actions = params["w4"].shape[1]

    # Lane-pad the first contraction dim and the tiny output dim to 128.
    in_pad = _round_up(in_features, _LANE)
    out_pad = _round_up(num_actions, _LANE)

    # Batch tile: big enough to amortize the ~0.35us/step overhead, but no
    # larger than the (sublane-rounded) batch for tiny demo batches.
    tb = min(block_b, max(_SUBLANE, _round_up(B, _SUBLANE)))
    b_pad = _round_up(max(B, tb), tb)

    # Zero-padded / casted operands.
    x_p = jnp.zeros((b_pad, in_pad), x.dtype).at[:B, :in_features].set(x)
    x_p = x_p.astype(compute_dtype)

    w1 = jnp.zeros((in_pad, h1), compute_dtype).at[:in_features, :].set(
        params["w1"].astype(compute_dtype))
    w2 = params["w2"].astype(compute_dtype)
    w3 = params["w3"].astype(compute_dtype)
    w4 = jnp.zeros((h3, out_pad), compute_dtype).at[:, :num_actions].set(
        params["w4"].astype(compute_dtype))

    b1 = params["b1"].astype(jnp.float32)
    b2 = params["b2"].astype(jnp.float32)
    b3 = params["b3"].astype(jnp.float32)
    b4 = jnp.zeros((1, out_pad), jnp.float32).at[:, :num_actions].set(
        params["b4"].astype(jnp.float32))

    const = lambda i: (0, 0)  # weights/biases: same block every grid step

    out = pl.pallas_call(
        dqn_mlp_kernel,
        out_shape=jax.ShapeDtypeStruct((b_pad, out_pad), jnp.float32),
        grid=(b_pad // tb,),
        in_specs=[
            pl.BlockSpec((tb, in_pad), lambda i: (i, 0)),   # x tile
            pl.BlockSpec((in_pad, h1), const),              # w1
            pl.BlockSpec((1, h1), const),                   # b1
            pl.BlockSpec((h1, h2), const),                  # w2
            pl.BlockSpec((1, h2), const),                   # b2
            pl.BlockSpec((h2, h3), const),                  # w3
            pl.BlockSpec((1, h3), const),                   # b3
            pl.BlockSpec((h3, out_pad), const),             # w4 (lane-padded)
            pl.BlockSpec((1, out_pad), const),              # b4 (lane-padded)
        ],
        out_specs=pl.BlockSpec((tb, out_pad), lambda i: (i, 0)),
        compiler_params=pltpu.CompilerParams(
            dimension_semantics=("parallel",)),  # v7x: shard batch over 2 TCs
    )(x_p, w1, b1, w2, b2, w3, b3, w4, b4)

    # Slice off batch + lane padding.
    return out[:B, :num_actions]


def init_params(key, in_features, num_actions):
    """Deterministic init mimicking torch.nn.Linear default
    (uniform(-1/sqrt(fan_in), 1/sqrt(fan_in)))."""
    dims = [(in_features, 256), (256, 128), (128, 32), (32, num_actions)]
    params = {}
    for i, (fan_in, fan_out) in enumerate(dims, start=1):
        key, kw, kb = jax.random.split(key, 3)
        bound = 1.0 / jnp.sqrt(jnp.float32(fan_in))
        params[f"w{i}"] = jax.random.uniform(
            kw, (fan_in, fan_out), jnp.float32, -bound, bound)
        params[f"b{i}"] = jax.random.uniform(
            kb, (1, fan_out), jnp.float32, -bound, bound)
    return params


def reference_forward(x, params, compute_dtype=jnp.float32):
    """Pure-JAX reference. Inputs of each dot are rounded to compute_dtype
    (to mirror the kernel's MXU input dtype) but the matmul itself runs in
    f32 with HIGHEST precision; bias/ReLU in f32."""
    def rnd(v):
        return v.astype(compute_dtype).astype(jnp.float32)

    def dot(a, w):
        return jnp.dot(rnd(a), rnd(w), precision=jax.lax.Precision.HIGHEST)

    h = jnp.maximum(dot(x, params["w1"]) + params["b1"], 0.0)
    h = jnp.maximum(dot(h, params["w2"]) + params["b2"], 0.0)
    h = jnp.maximum(dot(h, params["w3"]) + params["b3"], 0.0)
    return dot(h, params["w4"]) + params["b4"]


if __name__ == "__main__":
    # NOTE: at B=2 a Pallas kernel is pure launch/DMA overhead vs a fused XLA
    # call; in production, batch requests (>=256) before hitting this kernel.
    B = 2
    in_features = 64
    num_actions = 8

    key = jax.random.PRNGKey(0)
    key, kx = jax.random.split(key)
    x = jax.random.normal(kx, (B, in_features), jnp.float32)
    params = init_params(key, in_features, num_actions)

    # 1) Strict f32 path (exact vs reference).
    out_f32 = dqn_mlp_forward(x, params, compute_dtype=jnp.float32)
    out_f32 = jax.block_until_ready(out_f32)
    ref_f32 = reference_forward(x, params, jnp.float32)
    assert out_f32.shape == (B, num_actions), out_f32.shape
    assert jnp.allclose(out_f32, ref_f32, atol=1e-5, rtol=1e-5), \
        "f32 mismatch vs reference"

    # 2) Performance path: bf16 MXU inputs, f32 accumulation.
    out_bf16 = dqn_mlp_forward(x, params, compute_dtype=jnp.bfloat16)
    out_bf16 = jax.block_until_ready(out_bf16)
    ref_bf16 = reference_forward(x, params, jnp.bfloat16)
    assert out_bf16.shape == (B, num_actions), out_bf16.shape
    assert jnp.allclose(out_bf16, ref_bf16, atol=2e-2, rtol=2e-2), \
        "bf16 mismatch vs reference"

    print("KERNEL_OK")
</pallas_src>

<mosaic_0001>
module attributes {stable_mosaic.version = 11 : i64} {
  func.func @dqn_mlp_kernel(%arg0: i32, %arg1: memref<8x128xf32, #tpu.memory_space<vmem>>, %arg2: memref<128x256xf32, #tpu.memory_space<vmem>>, %arg3: memref<1x256xf32, #tpu.memory_space<vmem>>, %arg4: memref<256x128xf32, #tpu.memory_space<vmem>>, %arg5: memref<1x128xf32, #tpu.memory_space<vmem>>, %arg6: memref<128x32xf32, #tpu.memory_space<vmem>>, %arg7: memref<1x32xf32, #tpu.memory_space<vmem>>, %arg8: memref<32x128xf32, #tpu.memory_space<vmem>>, %arg9: memref<1x128xf32, #tpu.memory_space<vmem>>, %arg10: memref<8x128xf32, #tpu.memory_space<vmem>>) attributes {dimension_semantics = [#tpu.dimension_semantics<parallel>], iteration_bounds = array<i64: 1>, scalar_prefetch = 0 : i64, scratch_operands = 0 : i64, tpu.core_type = #tpu.core_type<tc>, window_params = [{transform_indices = @transform_0, window_bounds = array<i64: 8, 128>}, {pipeline_mode = #tpu.pipeline_mode<synchronous>, transform_indices = @transform_1, window_bounds = array<i64: 128, 256>}, {pipeline_mode = #tpu.pipeline_mode<synchronous>, transform_indices = @transform_2, window_bounds = array<i64: 1, 256>}, {pipeline_mode = #tpu.pipeline_mode<synchronous>, transform_indices = @transform_3, window_bounds = array<i64: 256, 128>}, {pipeline_mode = #tpu.pipeline_mode<synchronous>, transform_indices = @transform_4, window_bounds = array<i64: 1, 128>}, {pipeline_mode = #tpu.pipeline_mode<synchronous>, transform_indices = @transform_5, window_bounds = array<i64: 128, 32>}, {pipeline_mode = #tpu.pipeline_mode<synchronous>, transform_indices = @transform_6, window_bounds = array<i64: 1, 32>}, {pipeline_mode = #tpu.pipeline_mode<synchronous>, transform_indices = @transform_7, window_bounds = array<i64: 32, 128>}, {pipeline_mode = #tpu.pipeline_mode<synchronous>, transform_indices = @transform_8, window_bounds = array<i64: 1, 128>}, {transform_indices = @transform_9, window_bounds = array<i64: 8, 128>}]} {
    %c0 = arith.constant 0 : index
    %c0_0 = arith.constant 0 : index
    %0 = vector.load %arg1[%c0, %c0_0] : memref<8x128xf32, #tpu.memory_space<vmem>>, vector<8x128xf32>
    %c0_1 = arith.constant 0 : index
    %c0_2 = arith.constant 0 : index
    %1 = vector.load %arg2[%c0_1, %c0_2] : memref<128x256xf32, #tpu.memory_space<vmem>>, vector<128x256xf32>
    %cst = arith.constant dense<0.000000e+00> : vector<8x256xf32>
    %2 = tpu.matmul %0, %1, %cst {dimension_numbers = #tpu.dot_dimension_numbers<[1], [0], [0], [1], [0, 0, 1, 1], [], []>} : vector<8x128xf32>, vector<128x256xf32>, vector<8x256xf32> -> vector<8x256xf32>
    %c0_3 = arith.constant 0 : index
    %c0_4 = arith.constant 0 : index
    %3 = vector.load %arg3[%c0_3, %c0_4] : memref<1x256xf32, #tpu.memory_space<vmem>>, vector<1x256xf32>
    %4 = vector.broadcast %3 : vector<1x256xf32> to vector<8x256xf32>
    %5 = arith.addf %2, %4 : vector<8x256xf32>
    %cst_5 = arith.constant 0.000000e+00 : f32
    %6 = vector.broadcast %cst_5 : f32 to vector<8x256xf32>
    %7 = arith.maximumf %5, %6 : vector<8x256xf32>
    %c0_6 = arith.constant 0 : index
    %c0_7 = arith.constant 0 : index
    %8 = vector.load %arg4[%c0_6, %c0_7] : memref<256x128xf32, #tpu.memory_space<vmem>>, vector<256x128xf32>
    %cst_8 = arith.constant dense<0.000000e+00> : vector<8x128xf32>
    %9 = tpu.matmul %7, %8, %cst_8 {dimension_numbers = #tpu.dot_dimension_numbers<[1], [0], [0], [1], [0, 0, 1, 1], [], []>} : vector<8x256xf32>, vector<256x128xf32>, vector<8x128xf32> -> vector<8x128xf32>
    %c0_9 = arith.constant 0 : index
    %c0_10 = arith.constant 0 : index
    %10 = vector.load %arg5[%c0_9, %c0_10] : memref<1x128xf32, #tpu.memory_space<vmem>>, vector<1x128xf32>
    %11 = vector.broadcast %10 : vector<1x128xf32> to vector<8x128xf32>
    %12 = arith.addf %9, %11 : vector<8x128xf32>
    %cst_11 = arith.constant 0.000000e+00 : f32
    %13 = vector.broadcast %cst_11 : f32 to vector<8x128xf32>
    %14 = arith.maximumf %12, %13 : vector<8x128xf32>
    %c0_12 = arith.constant 0 : index
    %c0_13 = arith.constant 0 : index
    %15 = vector.load %arg6[%c0_12, %c0_13] : memref<128x32xf32, #tpu.memory_space<vmem>>, vector<128x32xf32>
    %cst_14 = arith.constant dense<0.000000e+00> : vector<8x32xf32>
    %16 = tpu.matmul %14, %15, %cst_14 {dimension_numbers = #tpu.dot_dimension_numbers<[1], [0], [0], [1], [0, 0, 1, 1], [], []>} : vector<8x128xf32>, vector<128x32xf32>, vector<8x32xf32> -> vector<8x32xf32>
    %c0_15 = arith.constant 0 : index
    %c0_16 = arith.constant 0 : index
    %17 = vector.load %arg7[%c0_15, %c0_16] : memref<1x32xf32, #tpu.memory_space<vmem>>, vector<1x32xf32>
    %18 = vector.broadcast %17 : vector<1x32xf32> to vector<8x32xf32>
    %19 = arith.addf %16, %18 : vector<8x32xf32>
    %cst_17 = arith.constant 0.000000e+00 : f32
    %20 = vector.broadcast %cst_17 : f32 to vector<8x32xf32>
    %21 = arith.maximumf %19, %20 : vector<8x32xf32>
    %c0_18 = arith.constant 0 : index
    %c0_19 = arith.constant 0 : index
    %22 = vector.load %arg8[%c0_18, %c0_19] : memref<32x128xf32, #tpu.memory_space<vmem>>, vector<32x128xf32>
    %cst_20 = arith.constant dense<0.000000e+00> : vector<8x128xf32>
    %23 = tpu.matmul %21, %22, %cst_20 {dimension_numbers = #tpu.dot_dimension_numbers<[1], [0], [0], [1], [0, 0, 1, 1], [], []>} : vector<8x32xf32>, vector<32x128xf32>, vector<8x128xf32> -> vector<8x128xf32>
    %c0_21 = arith.constant 0 : index
    %c0_22 = arith.constant 0 : index
    %24 = vector.load %arg9[%c0_21, %c0_22] : memref<1x128xf32, #tpu.memory_space<vmem>>, vector<1x128xf32>
    %25 = vector.broadcast %24 : vector<1x128xf32> to vector<8x128xf32>
    %26 = arith.addf %23, %25 : vector<8x128xf32>
    %c0_23 = arith.constant 0 : index
    %c0_24 = arith.constant 0 : index
    %27 = vector.load %arg10[%c0_23, %c0_24] : memref<8x128xf32, #tpu.memory_space<vmem>>, vector<8x128xf32>
    tpu.vector_store %arg10[%c0_23, %c0_24], %26 {strides = array<i32>} : memref<8x128xf32, #tpu.memory_space<vmem>>, vector<8x128xf32>,
    return
  }
  func.func @transform_0(%arg0: i32) -> (i32, i32) {
    %c0_i32 = arith.constant 0 : i32
    %c0_i32_0 = arith.constant 0 : i32
    return %arg0, %c0_i32 : i32, i32
  }
  func.func @transform_1(%arg0: i32) -> (i32, i32) {
    %c0_i32 = arith.constant 0 : i32
    %c0_i32_0 = arith.constant 0 : i32
    %c0_i32_1 = arith.constant 0 : i32
    return %c0_i32, %c0_i32_0 : i32, i32
  }
  func.func @transform_2(%arg0: i32) -> (i32, i32) {
    %c0_i32 = arith.constant 0 : i32
    %c0_i32_0 = arith.constant 0 : i32
    %c0_i32_1 = arith.constant 0 : i32
    return %c0_i32, %c0_i32_0 : i32, i32
  }
  func.func @transform_3(%arg0: i32) -> (i32, i32) {
    %c0_i32 = arith.constant 0 : i32
    %c0_i32_0 = arith.constant 0 : i32
    %c0_i32_1 = arith.constant 0 : i32
    return %c0_i32, %c0_i32_0 : i32, i32
  }
  func.func @transform_4(%arg0: i32) -> (i32, i32) {
    %c0_i32 = arith.constant 0 : i32
    %c0_i32_0 = arith.constant 0 : i32
    %c0_i32_1 = arith.constant 0 : i32
    return %c0_i32, %c0_i32_0 : i32, i32
  }
  func.func @transform_5(%arg0: i32) -> (i32, i32) {
    %c0_i32 = arith.constant 0 : i32
    %c0_i32_0 = arith.constant 0 : i32
    %c0_i32_1 = arith.constant 0 : i32
    return %c0_i32, %c0_i32_0 : i32, i32
  }
  func.func @transform_6(%arg0: i32) -> (i32, i32) {
    %c0_i32 = arith.constant 0 : i32
    %c0_i32_0 = arith.constant 0 : i32
    %c0_i32_1 = arith.constant 0 : i32
    return %c0_i32, %c0_i32_0 : i32, i32
  }
  func.func @transform_7(%arg0: i32) -> (i32, i32) {
    %c0_i32 = arith.constant 0 : i32
    %c0_i32_0 = arith.constant 0 : i32
    %c0_i32_1 = arith.constant 0 : i32
    return %c0_i32, %c0_i32_0 : i32, i32
  }
  func.func @transform_8(%arg0: i32) -> (i32, i32) {
    %c0_i32 = arith.constant 0 : i32
    %c0_i32_0 = arith.constant 0 : i32
    %c0_i32_1 = arith.constant 0 : i32
    return %c0_i32, %c0_i32_0 : i32, i32
  }
  func.func @transform_9(%arg0: i32) -> (i32, i32) {
    %c0_i32 = arith.constant 0 : i32
    %c0_i32_0 = arith.constant 0 : i32
    return %arg0, %c0_i32 : i32, i32
  }
}

</mosaic_0001>

<llo_original>
// kernel: tpu_custom_call.1
$region0: #{tpu_custom_call.1}
  #allocation0 [shape = 'u32[]', space=smem, size = 0x4, offset = 0x4, fixed_abs, tag = 'smem constant byte address 0x4 - core index']
  #allocation1 [shape = 'u32[144,128]{1,0:T(1,128)}', space=vmem, size = 0x12000, scoped, tag = 'internal scratch']
  %s0 = inlined_call_operand.vmem [shape: f32[8,128], index: 0, kind: input, shape index: {}]
  %s1 = inlined_call_operand.hbm [shape: f32[128,256], index: 1, kind: input, shape index: {}]
  %s2 = inlined_call_operand.vmem [shape: f32[1,256], index: 2, kind: input, shape index: {}]
  %s3 = inlined_call_operand.hbm [shape: f32[256,128], index: 3, kind: input, shape index: {}]
  %s4 = inlined_call_operand.vmem [shape: f32[1,128], index: 4, kind: input, shape index: {}]
  %s5 = inlined_call_operand.vmem [shape: f32[128,32], index: 5, kind: input, shape index: {}]
  %s6 = inlined_call_operand.vmem [shape: f32[1,32], index: 6, kind: input, shape index: {}]
  %s7 = inlined_call_operand.vmem [shape: f32[32,128], index: 7, kind: input, shape index: {}]
  %s8 = inlined_call_operand.vmem [shape: f32[1,128], index: 8, kind: input, shape index: {}]
  %s9 = inlined_call_operand.hbm [shape: f32[8,128], index: 9, kind: output, shape index: {}]
  %s10 = sld [smem:[#allocation0]]
  $region54: #{tpu_custom_call.1} parent=0
    _
  %s12 = ssub.s32 1, %s10
  %s13 = scalar_select 0, %s12, %s10
  $region1: #{tpu_custom_call.1} parent=0
    #allocation2 [shape = 'u8[131072]{0}', space=vmem, size = 0x20000, scoped, tag = 'input window, operand 1, single buffered']
    #allocation3 [shape = 's32[1]{0}', space=sflag, size = 0x4, scoped, tag = 'scoped memory for tpu_custom_call.1']
    #allocation4 [shape = 's32[1]{0}', space=sflag, size = 0x4, scoped, tag = 'scoped memory for tpu_custom_call.1']
    #allocation5 [shape = 'u8[131072]{0}', space=vmem, size = 0x20000, scoped, tag = 'input window, operand 3, single buffered']
    #allocation6 [shape = 's32[1]{0}', space=sflag, size = 0x4, scoped, tag = 'scoped memory for tpu_custom_call.1']
    #allocation7 [shape = 'u8[4096]{0}', space=vmem, size = 0x1000, scoped, tag = 'output window, operand 0, single buffered']
    %14 = vsyncpa [#allocation3], 0
    %15 = vsyncpa [#allocation6], 0
    %16 = vsyncpa [#allocation4], 0
    // Predicated region
    $region2: #{tpu_custom_call.1} parent=1 // pred_check
      _
    $region3: #{tpu_custom_call.1} parent=1 // pred_check_branch
      %18 = sbr.rel (0) target = $region5
    $region4: #{tpu_custom_call.1} parent=1 // pred_region
      _
    $region5: #{tpu_custom_call.1} parent=1 // pred_fallthru
      _
    // Predicated region
    $region6: #{tpu_custom_call.1} parent=1 // pred_check
      _
    $region7: #{tpu_custom_call.1} parent=1 // pred_check_branch
      %20 = sbr.rel (0) target = $region9
    $region8: #{tpu_custom_call.1} parent=1 // pred_region
      %s22 = ssub.s32 4096, 4096
      %23 = vsyncadd [#allocation3], %s22
      %s24 = sshll.u32 [#allocation2], 4
      %s25 = int_to_ptr.vmem [resolvable:$true] %s24
      %30 = dma.hbm_to_vmem [thread:$0]  %s1, 4096, %s25, [#allocation3], 256, 256, 16
    $region9: #{tpu_custom_call.1} parent=1 // pred_fallthru
      _
    // Predicated region
    $region10: #{tpu_custom_call.1} parent=1 // pred_check
      _
    $region11: #{tpu_custom_call.1} parent=1 // pred_check_branch
      %32 = sbr.rel (0) target = $region13
    $region12: #{tpu_custom_call.1} parent=1 // pred_region
      _
    $region13: #{tpu_custom_call.1} parent=1 // pred_fallthru
      _
    // Predicated region
    $region14: #{tpu_custom_call.1} parent=1 // pred_check
      _
    $region15: #{tpu_custom_call.1} parent=1 // pred_check_branch
      %34 = sbr.rel (0) target = $region17
    $region16: #{tpu_custom_call.1} parent=1 // pred_region
      %s36 = ssub.s32 4096, 4096
      %37 = vsyncadd [#allocation6], %s36
      %s38 = sshll.u32 [#allocation5], 4
      %s39 = int_to_ptr.vmem [resolvable:$true] %s38
      %44 = dma.hbm_to_vmem [thread:$0]  %s3, 4096, %s39, [#allocation6], 128, 128, 8
    $region17: #{tpu_custom_call.1} parent=1 // pred_fallthru
      _
    // Predicated region
    $region18: #{tpu_custom_call.1} parent=1 // pred_check
      _
    $region19: #{tpu_custom_call.1} parent=1 // pred_check_branch
      %46 = sbr.rel (0) target = $region21
    $region20: #{tpu_custom_call.1} parent=1 // pred_region
      _
    $region21: #{tpu_custom_call.1} parent=1 // pred_fallthru
      _
    // Predicated region
    $region22: #{tpu_custom_call.1} parent=1 // pred_check
      _
    $region23: #{tpu_custom_call.1} parent=1 // pred_check_branch
      %48 = sbr.rel (0) target = $region25
    $region24: #{tpu_custom_call.1} parent=1 // pred_region
      _
    $region25: #{tpu_custom_call.1} parent=1 // pred_fallthru
      _
    // Predicated region
    $region26: #{tpu_custom_call.1} parent=1 // pred_check
      _
    $region27: #{tpu_custom_call.1} parent=1 // pred_check_branch
      %50 = sbr.rel (0) target = $region29
    $region28: #{tpu_custom_call.1} parent=1 // pred_region
      _
    $region29: #{tpu_custom_call.1} parent=1 // pred_fallthru
      _
    // Predicated region
    $region30: #{tpu_custom_call.1} parent=1 // pred_check
      _
    $region31: #{tpu_custom_call.1} parent=1 // pred_check_branch
      %52 = sbr.rel (0) target = $region33
    $region32: #{tpu_custom_call.1} parent=1 // pred_region
      _
    $region33: #{tpu_custom_call.1} parent=1 // pred_fallthru
      _
    // Predicated region
    $region34: #{tpu_custom_call.1} parent=1 // pred_check
      _
    $region35: #{tpu_custom_call.1} parent=1 // pred_check_branch
      %54 = sbr.rel (0) target = $region37
    $region36: #{tpu_custom_call.1} parent=1 // pred_region
      _
    $region37: #{tpu_custom_call.1} parent=1 // pred_fallthru
      _
    // Predicated region
    $region38: #{tpu_custom_call.1} parent=1 // pred_check
      _
    $region39: #{tpu_custom_call.1} parent=1 // pred_check_branch
      %56 = sbr.rel (0) target = $region41
    $region40: #{tpu_custom_call.1} parent=1 // pred_region
      %57 = dma.done [#allocation3], 4096
    $region41: #{tpu_custom_call.1} parent=1 // pred_fallthru
      _
    // Predicated region
    $region42: #{tpu_custom_call.1} parent=1 // pred_check
      _
    $region43: #{tpu_custom_call.1} parent=1 // pred_check_branch
      %59 = sbr.rel (0) target = $region45
    $region44: #{tpu_custom_call.1} parent=1 // pred_region
      %60 = dma.done [#allocation6], 4096
    $region45: #{tpu_custom_call.1} parent=1 // pred_fallthru
      _
    %v61 = vld [vmem:[%s0] sm:$0xff]
    %v62 = vld [vmem:[#allocation2] sm:$0xff]
    %v63 = vld [vmem:[#allocation2 + $0x8] sm:$0xff]
    %v64 = vld [vmem:[#allocation2 + $0x10] sm:$0xff]
    %v65 = vld [vmem:[#allocation2 + $0x18] sm:$0xff]
    %v66 = vld [vmem:[#allocation2 + $0x20] sm:$0xff]
    %v67 = vld [vmem:[#allocation2 + $0x28] sm:$0xff]
    %v68 = vld [vmem:[#allocation2 + $0x30] sm:$0xff]
    %v69 = vld [vmem:[#allocation2 + $0x38] sm:$0xff]
    %v70 = vld [vmem:[#allocation2 + $0x40] sm:$0xff]
    %v71 = vld [vmem:[#allocation2 + $0x48] sm:$0xff]
    %v72 = vld [vmem:[#allocation2 + $0x50] sm:$0xff]
    %v73 = vld [vmem:[#allocation2 + $0x58] sm:$0xff]
    %v74 = vld [vmem:[#allocation2 + $0x60] sm:$0xff]
    %v75 = vld [vmem:[#allocation2 + $0x68] sm:$0xff]
    %v76 = vld [vmem:[#allocation2 + $0x70] sm:$0xff]
    %v77 = vld [vmem:[#allocation2 + $0x78] sm:$0xff]
    %v78 = vld [vmem:[#allocation2 + $0x80] sm:$0xff]
    %v79 = vld [vmem:[#allocation2 + $0x88] sm:$0xff]
    %v80 = vld [vmem:[#allocation2 + $0x90] sm:$0xff]
    %v81 = vld [vmem:[#allocation2 + $0x98] sm:$0xff]
    %v82 = vld [vmem:[#allocation2 + $0xa0] sm:$0xff]
    %v83 = vld [vmem:[#allocation2 + $0xa8] sm:$0xff]
    %v84 = vld [vmem:[#allocation2 + $0xb0] sm:$0xff]
    %v85 = vld [vmem:[#allocation2 + $0xb8] sm:$0xff]
    %v86 = vld [vmem:[#allocation2 + $0xc0] sm:$0xff]
    %v87 = vld [vmem:[#allocation2 + $0xc8] sm:$0xff]
    %v88 = vld [vmem:[#allocation2 + $0xd0] sm:$0xff]
    %v89 = vld [vmem:[#allocation2 + $0xd8] sm:$0xff]
    %v90 = vld [vmem:[#allocation2 + $0xe0] sm:$0xff]
    %v91 = vld [vmem:[#allocation2 + $0xe8] sm:$0xff]
    %v92 = vld [vmem:[#allocation2 + $0xf0] sm:$0xff]
    %v93 = vld [vmem:[#allocation2 + $0xf8] sm:$0xff]
    %v94 = vld [vmem:[%s2] sm:$0x3]
    %v96 = vlaneseq
    %v97 = vshrl.u32 %v96, 7
    %v98 = vsub.s32 0, %v97
    %v99 = vrot.slane %v94, %v98
    %v100 = vlaneseq
    %v101 = vshrl.u32 %v100, 7
    %v102 = vsub.s32 1, %v101
    %v103 = vrot.slane %v94, %v102
    %106 = vmatprep.subr.mxu0 %v63
    %107 = vmatpush1.msra.mxu0 %v62
    %108 = vmatprep.subr.mxu0 %v65
    %109 = vmatpush1.msra.mxu0 %v64
    %110 = vmatprep.subr.mxu0 %v67
    %111 = vmatpush1.msra.mxu0 %v66
    %112 = vmatprep.subr.mxu0 %v69
    %113 = vmatpush1.msra.mxu0 %v68
    %114 = vmatprep.subr.mxu0 %v71
    %115 = vmatpush1.msra.mxu0 %v70
    %116 = vmatprep.subr.mxu0 %v73
    %117 = vmatpush1.msra.mxu0 %v72
    %118 = vmatprep.subr.mxu0 %v75
    %119 = vmatpush1.msra.mxu0 %v74
    %120 = vmatprep.subr.mxu0 %v77
    %121 = vmatpush1.msra.mxu0 %v76
    %122 = vmatprep.subr.mxu0 %v79
    %123 = vmatpush1.msra.mxu0 %v78
    %124 = vmatprep.subr.mxu0 %v81
    %125 = vmatpush1.msra.mxu0 %v80
    %126 = vmatprep.subr.mxu0 %v83
    %127 = vmatpush1.msra.mxu0 %v82
    %128 = vmatprep.subr.mxu0 %v85
    %129 = vmatpush1.msra.mxu0 %v84
    %130 = vmatprep.subr.mxu0 %v87
    %131 = vmatpush1.msra.mxu0 %v86
    %132 = vmatprep.subr.mxu0 %v89
    %133 = vmatpush1.msra.mxu0 %v88
    %134 = vmatprep.subr.mxu0 %v91
    %135 = vmatpush1.msra.mxu0 %v90
    %136 = vmatprep.subr.mxu0 %v93
    %137 = vmatpush1.msra.mxu0 %v92
    %138 = vmatprep.subr.mxu0 0.0
    %139 = vmatpush1.msra.mxu0 0.0
    %140 = vmatprep.subr.mxu0 0.0
    %141 = vmatpush1.msra.mxu0 0.0
    %142 = vmatprep.subr.mxu0 0.0
    %143 = vmatpush1.msra.mxu0 0.0
    %144 = vmatprep.subr.mxu0 0.0
    %145 = vmatpush1.msra.mxu0 0.0
    %146 = vmatprep.subr.mxu0 0.0
    %147 = vmatpush1.msra.mxu0 0.0
    %148 = vmatprep.subr.mxu0 0.0
    %149 = vmatpush1.msra.mxu0 0.0
    %150 = vmatprep.subr.mxu0 0.0
    %151 = vmatpush1.msra.mxu0 0.0
    %152 = vmatprep.subr.mxu0 0.0
    %153 = vmatpush1.msra.mxu0 0.0
    %154 = vmatprep.subr.mxu0 0.0
    %155 = vmatpush1.msra.mxu0 0.0
    %156 = vmatprep.subr.mxu0 0.0
    %157 = vmatpush1.msra.mxu0 0.0
    %158 = vmatprep.subr.mxu0 0.0
    %159 = vmatpush1.msra.mxu0 0.0
    %160 = vmatprep.subr.mxu0 0.0
    %161 = vmatpush1.msra.mxu0 0.0
    %162 = vmatprep.subr.mxu0 0.0
    %163 = vmatpush1.msra.mxu0 0.0
    %164 = vmatprep.subr.mxu0 0.0
    %165 = vmatpush1.msra.mxu0 0.0
    %166 = vmatprep.subr.mxu0 0.0
    %167 = vmatpush1.msra.mxu0 0.0
    %168 = vmatprep.subr.mxu0 0.0
    %169 = vmatpush1.msra.mxu0 0.0
    %170 = vmatprep.mubr.f32.mxu0 0.0
    %171 = vmatmul.mubr.f32.gmra.mrb[0].mxu0 %v61
    %v172 = vpop.f32.mrb[0].mxu0
    %v173 = vadd.f32 %v99, %v172
    %v174 = vpop.f32.mrb[0].mxu0
    %v175 = vadd.f32 %v103, %v174
    %176 = vdwg.mxu0
    %v177 = vmax.f32 %v173, 0.0
    %v178 = vmax.f32 %v175, 0.0
    %v179 = vld [vmem:[#allocation5] sm:$0xff]
    %v180 = vld [vmem:[#allocation5 + $0x8] sm:$0xff]
    %v181 = vld [vmem:[#allocation5 + $0x10] sm:$0xff]
    %v182 = vld [vmem:[#allocation5 + $0x18] sm:$0xff]
    %v183 = vld [vmem:[#allocation5 + $0x20] sm:$0xff]
    %v184 = vld [vmem:[#allocation5 + $0x28] sm:$0xff]
    %v185 = vld [vmem:[#allocation5 + $0x30] sm:$0xff]
    %v186 = vld [vmem:[#allocation5 + $0x38] sm:$0xff]
    %v187 = vld [vmem:[#allocation5 + $0x40] sm:$0xff]
    %v188 = vld [vmem:[#allocation5 + $0x48] sm:$0xff]
    %v189 = vld [vmem:[#allocation5 + $0x50] sm:$0xff]
    %v190 = vld [vmem:[#allocation5 + $0x58] sm:$0xff]
    %v191 = vld [vmem:[#allocation5 + $0x60] sm:$0xff]
    %v192 = vld [vmem:[#allocation5 + $0x68] sm:$0xff]
    %v193 = vld [vmem:[#allocation5 + $0x70] sm:$0xff]
    %v194 = vld [vmem:[#allocation5 + $0x78] sm:$0xff]
    %v195 = vld [vmem:[#allocation5 + $0x80] sm:$0xff]
    %v196 = vld [vmem:[#allocation5 + $0x88] sm:$0xff]
    %v197 = vld [vmem:[#allocation5 + $0x90] sm:$0xff]
    %v198 = vld [vmem:[#allocation5 + $0x98] sm:$0xff]
    %v199 = vld [vmem:[#allocation5 + $0xa0] sm:$0xff]
    %v200 = vld [vmem:[#allocation5 + $0xa8] sm:$0xff]
    %v201 = vld [vmem:[#allocation5 + $0xb0] sm:$0xff]
    %v202 = vld [vmem:[#allocation5 + $0xb8] sm:$0xff]
    %v203 = vld [vmem:[#allocation5 + $0xc0] sm:$0xff]
    %v204 = vld [vmem:[#allocation5 + $0xc8] sm:$0xff]
    %v205 = vld [vmem:[#allocation5 + $0xd0] sm:$0xff]
    %v206 = vld [vmem:[#allocation5 + $0xd8] sm:$0xff]
    %v207 = vld [vmem:[#allocation5 + $0xe0] sm:$0xff]
    %v208 = vld [vmem:[#allocation5 + $0xe8] sm:$0xff]
    %v209 = vld [vmem:[#allocation5 + $0xf0] sm:$0xff]
    %v210 = vld [vmem:[#allocation5 + $0xf8] sm:$0xff]
    %v211 = vld [vmem:[%s4] sm:$0x1]
    %v213 = vlaneseq
    %v214 = vshrl.u32 %v213, 7
    %v215 = vsub.s32 0, %v214
    %v216 = vrot.slane %v211, %v215
    %218 = vmatprep.subr.mxu0 0.0
    %219 = vmatpush1.msra.mxu0 %v179
    %220 = vmatprep.subr.mxu0 0.0
    %221 = vmatpush1.msra.mxu0 %v180
    %222 = vmatprep.subr.mxu0 0.0
    %223 = vmatpush1.msra.mxu0 %v181
    %224 = vmatprep.subr.mxu0 0.0
    %225 = vmatpush1.msra.mxu0 %v182
    %226 = vmatprep.subr.mxu0 0.0
    %227 = vmatpush1.msra.mxu0 %v183
    %228 = vmatprep.subr.mxu0 0.0
    %229 = vmatpush1.msra.mxu0 %v184
    %230 = vmatprep.subr.mxu0 0.0
    %231 = vmatpush1.msra.mxu0 %v185
    %232 = vmatprep.subr.mxu0 0.0
    %233 = vmatpush1.msra.mxu0 %v186
    %234 = vmatprep.subr.mxu0 0.0
    %235 = vmatpush1.msra.mxu0 %v187
    %236 = vmatprep.subr.mxu0 0.0
    %237 = vmatpush1.msra.mxu0 %v188
    %238 = vmatprep.subr.mxu0 0.0
    %239 = vmatpush1.msra.mxu0 %v189
    %240 = vmatprep.subr.mxu0 0.0
    %241 = vmatpush1.msra.mxu0 %v190
    %242 = vmatprep.subr.mxu0 0.0
    %243 = vmatpush1.msra.mxu0 %v191
    %244 = vmatprep.subr.mxu0 0.0
    %245 = vmatpush1.msra.mxu0 %v192
    %246 = vmatprep.subr.mxu0 0.0
    %247 = vmatpush1.msra.mxu0 %v193
    %248 = vmatprep.subr.mxu0 0.0
    %249 = vmatpush1.msra.mxu0 %v194
    %250 = vmatprep.subr.mxu0 0.0
    %251 = vmatpush1.msra.mxu0 %v195
    %252 = vmatprep.subr.mxu0 0.0
    %253 = vmatpush1.msra.mxu0 %v196
    %254 = vmatprep.subr.mxu0 0.0
    %255 = vmatpush1.msra.mxu0 %v197
    %256 = vmatprep.subr.mxu0 0.0
    %257 = vmatpush1.msra.mxu0 %v198
    %258 = vmatprep.subr.mxu0 0.0
    %259 = vmatpush1.msra.mxu0 %v199
    %260 = vmatprep.subr.mxu0 0.0
    %261 = vmatpush1.msra.mxu0 %v200
    %262 = vmatprep.subr.mxu0 0.0
    %263 = vmatpush1.msra.mxu0 %v201
    %264 = vmatprep.subr.mxu0 0.0
    %265 = vmatpush1.msra.mxu0 %v202
    %266 = vmatprep.subr.mxu0 0.0
    %267 = vmatpush1.msra.mxu0 %v203
    %268 = vmatprep.subr.mxu0 0.0
    %269 = vmatpush1.msra.mxu0 %v204
    %270 = vmatprep.subr.mxu0 0.0
    %271 = vmatpush1.msra.mxu0 %v205
    %272 = vmatprep.subr.mxu0 0.0
    %273 = vmatpush1.msra.mxu0 %v206
    %274 = vmatprep.subr.mxu0 0.0
    %275 = vmatpush1.msra.mxu0 %v207
    %276 = vmatprep.subr.mxu0 0.0
    %277 = vmatpush1.msra.mxu0 %v208
    %278 = vmatprep.subr.mxu0 0.0
    %279 = vmatpush1.msra.mxu0 %v209
    %280 = vmatprep.subr.mxu0 0.0
    %281 = vmatpush1.msra.mxu0 %v210
    %282 = vmatprep.mubr.f32.mxu0 %v178
    %283 = vmatmul.mubr.f32.gmra.mrb[0].mxu0 %v177
    %v284 = vpop.f32.mrb[0].mxu0
    %v285 = vadd.f32 %v216, %v284
    %v286 = vpop.f32.mrb[0].mxu0
    %287 = vdwg.mxu0
    %v288 = vmax.f32 %v285, 0.0
    %v289 = vld [vmem:[%s5] sm:$0xff]
    %v290 = vld [vmem:[%s5 + $0x8] sm:$0xff]
    %v291 = vld [vmem:[%s5 + $0x10] sm:$0xff]
    %v292 = vld [vmem:[%s5 + $0x18] sm:$0xff]
    %v293 = vld [vmem:[%s5 + $0x20] sm:$0xff]
    %v294 = vld [vmem:[%s5 + $0x28] sm:$0xff]
    %v295 = vld [vmem:[%s5 + $0x30] sm:$0xff]
    %v296 = vld [vmem:[%s5 + $0x38] sm:$0xff]
    %v297 = vld [vmem:[%s5 + $0x40] sm:$0xff]
    %v298 = vld [vmem:[%s5 + $0x48] sm:$0xff]
    %v299 = vld [vmem:[%s5 + $0x50] sm:$0xff]
    %v300 = vld [vmem:[%s5 + $0x58] sm:$0xff]
    %v301 = vld [vmem:[%s5 + $0x60] sm:$0xff]
    %v302 = vld [vmem:[%s5 + $0x68] sm:$0xff]
    %v303 = vld [vmem:[%s5 + $0x70] sm:$0xff]
    %v304 = vld [vmem:[%s5 + $0x78] sm:$0xff]
    %v305 = vld [vmem:[%s6] sm:$0x1]
    %v307 = vlaneseq
    %v308 = vshrl.u32 %v307, 7
    %v309 = vsub.s32 0, %v308
    %v310 = vrot.slane %v305, %v309
    %312 = vmatprep.subr.mxu0 0.0
    %313 = vmatpush1.msra.mxu0 %v289
    %314 = vmatprep.subr.mxu0 0.0
    %315 = vmatpush1.msra.mxu0 %v290
    %316 = vmatprep.subr.mxu0 0.0
    %317 = vmatpush1.msra.mxu0 %v291
    %318 = vmatprep.subr.mxu0 0.0
    %319 = vmatpush1.msra.mxu0 %v292
    %320 = vmatprep.subr.mxu0 0.0
    %321 = vmatpush1.msra.mxu0 %v293
    %322 = vmatprep.subr.mxu0 0.0
    %323 = vmatpush1.msra.mxu0 %v294
    %324 = vmatprep.subr.mxu0 0.0
    %325 = vmatpush1.msra.mxu0 %v295
    %326 = vmatprep.subr.mxu0 0.0
    %327 = vmatpush1.msra.mxu0 %v296
    %328 = vmatprep.subr.mxu0 0.0
    %329 = vmatpush1.msra.mxu0 %v297
    %330 = vmatprep.subr.mxu0 0.0
    %331 = vmatpush1.msra.mxu0 %v298
    %332 = vmatprep.subr.mxu0 0.0
    %333 = vmatpush1.msra.mxu0 %v299
    %334 = vmatprep.subr.mxu0 0.0
    %335 = vmatpush1.msra.mxu0 %v300
    %336 = vmatprep.subr.mxu0 0.0
    %337 = vmatpush1.msra.mxu0 %v301
    %338 = vmatprep.subr.mxu0 0.0
    %339 = vmatpush1.msra.mxu0 %v302
    %340 = vmatprep.subr.mxu0 0.0
    %341 = vmatpush1.msra.mxu0 %v303
    %342 = vmatprep.subr.mxu0 0.0
    %343 = vmatpush1.msra.mxu0 %v304
    %344 = vmatprep.subr.mxu0 0.0
    %345 = vmatpush1.msra.mxu0 0.0
    %346 = vmatprep.subr.mxu0 0.0
    %347 = vmatpush1.msra.mxu0 0.0
    %348 = vmatprep.subr.mxu0 0.0
    %349 = vmatpush1.msra.mxu0 0.0
    %350 = vmatprep.subr.mxu0 0.0
    %351 = vmatpush1.msra.mxu0 0.0
    %352 = vmatprep.subr.mxu0 0.0
    %353 = vmatpush1.msra.mxu0 0.0
    %354 = vmatprep.subr.mxu0 0.0
    %355 = vmatpush1.msra.mxu0 0.0
    %356 = vmatprep.subr.mxu0 0.0
    %357 = vmatpush1.msra.mxu0 0.0
    %358 = vmatprep.subr.mxu0 0.0
    %359 = vmatpush1.msra.mxu0 0.0
    %360 = vmatprep.subr.mxu0 0.0
    %361 = vmatpush1.msra.mxu0 0.0
    %362 = vmatprep.subr.mxu0 0.0
    %363 = vmatpush1.msra.mxu0 0.0
    %364 = vmatprep.subr.mxu0 0.0
    %365 = vmatpush1.msra.mxu0 0.0
    %366 = vmatprep.subr.mxu0 0.0
    %367 = vmatpush1.msra.mxu0 0.0
    %368 = vmatprep.subr.mxu0 0.0
    %369 = vmatpush1.msra.mxu0 0.0
    %370 = vmatprep.subr.mxu0 0.0
    %371 = vmatpush1.msra.mxu0 0.0
    %372 = vmatprep.subr.mxu0 0.0
    %373 = vmatpush1.msra.mxu0 0.0
    %374 = vmatprep.subr.mxu0 0.0
    %375 = vmatpush1.msra.mxu0 0.0
    %376 = vmatprep.mubr.f32.mxu0 0.0
    %377 = vmatmul.mubr.f32.gmra.mrb[0].mxu0 %v288
    %v378 = vpop.f32.mrb[0].mxu0
    %v379 = vadd.f32 %v310, %v378
    %v380 = vpop.f32.mrb[0].mxu0
    %381 = vdwg.mxu0
    %v382 = vmax.f32 %v379, 0.0
    %v383 = vld [vmem:[%s7] sm:$0xff]
    %v384 = vld [vmem:[%s7 + $0x8] sm:$0xff]
    %v385 = vld [vmem:[%s7 + $0x10] sm:$0xff]
    %v386 = vld [vmem:[%s7 + $0x18] sm:$0xff]
    %v387 = vld [vmem:[%s8] sm:$0x1]
    %v389 = vlaneseq
    %v390 = vshrl.u32 %v389, 7
    %v391 = vsub.s32 0, %v390
    %v392 = vrot.slane %v387, %v391
    %vm394 = vcmask 261120
    %v396 = vsel %vm394, %v382, 0
    %398 = vmatprep.subr.mxu0 0.0
    %399 = vmatpush1.msra.mxu0 %v383
    %400 = vmatprep.subr.mxu0 0.0
    %401 = vmatpush1.msra.mxu0 %v384
    %402 = vmatprep.subr.mxu0 0.0
    %403 = vmatpush1.msra.mxu0 %v385
    %404 = vmatprep.subr.mxu0 0.0
    %405 = vmatpush1.msra.mxu0 %v386
    %406 = vmatprep.subr.mxu0 0.0
    %407 = vmatpush1.msra.mxu0 0.0
    %408 = vmatprep.subr.mxu0 0.0
    %409 = vmatpush1.msra.mxu0 0.0
    %410 = vmatprep.subr.mxu0 0.0
    %411 = vmatpush1.msra.mxu0 0.0
    %412 = vmatprep.subr.mxu0 0.0
    %413 = vmatpush1.msra.mxu0 0.0
    %414 = vmatprep.subr.mxu0 0.0
    %415 = vmatpush1.msra.mxu0 0.0
    %416 = vmatprep.subr.mxu0 0.0
    %417 = vmatpush1.msra.mxu0 0.0
    %418 = vmatprep.subr.mxu0 0.0
    %419 = vmatpush1.msra.mxu0 0.0
    %420 = vmatprep.subr.mxu0 0.0
    %421 = vmatpush1.msra.mxu0 0.0
    %422 = vmatprep.subr.mxu0 0.0
    %423 = vmatpush1.msra.mxu0 0.0
    %424 = vmatprep.subr.mxu0 0.0
    %425 = vmatpush1.msra.mxu0 0.0
    %426 = vmatprep.subr.mxu0 0.0
    %427 = vmatpush1.msra.mxu0 0.0
    %428 = vmatprep.subr.mxu0 0.0
    %429 = vmatpush1.msra.mxu0 0.0
    %430 = vmatprep.subr.mxu0 0.0
    %431 = vmatpush1.msra.mxu0 0.0
    %432 = vmatprep.subr.mxu0 0.0
    %433 = vmatpush1.msra.mxu0 0.0
    %434 = vmatprep.subr.mxu0 0.0
    %435 = vmatpush1.msra.mxu0 0.0
    %436 = vmatprep.subr.mxu0 0.0
    %437 = vmatpush1.msra.mxu0 0.0
    %438 = vmatprep.subr.mxu0 0.0
    %439 = vmatpush1.msra.mxu0 0.0
    %440 = vmatprep.subr.mxu0 0.0
    %441 = vmatpush1.msra.mxu0 0.0
    %442 = vmatprep.subr.mxu0 0.0
    %443 = vmatpush1.msra.mxu0 0.0
    %444 = vmatprep.subr.mxu0 0.0
    %445 = vmatpush1.msra.mxu0 0.0
    %446 = vmatprep.subr.mxu0 0.0
    %447 = vmatpush1.msra.mxu0 0.0
    %448 = vmatprep.subr.mxu0 0.0
    %449 = vmatpush1.msra.mxu0 0.0
    %450 = vmatprep.subr.mxu0 0.0
    %451 = vmatpush1.msra.mxu0 0.0
    %452 = vmatprep.subr.mxu0 0.0
    %453 = vmatpush1.msra.mxu0 0.0
    %454 = vmatprep.subr.mxu0 0.0
    %455 = vmatpush1.msra.mxu0 0.0
    %456 = vmatprep.subr.mxu0 0.0
    %457 = vmatpush1.msra.mxu0 0.0
    %458 = vmatprep.subr.mxu0 0.0
    %459 = vmatpush1.msra.mxu0 0.0
    %460 = vmatprep.subr.mxu0 0.0
    %461 = vmatpush1.msra.mxu0 0.0
    %462 = vmatprep.mubr.f32.mxu0 0.0
    %463 = vmatmul.mubr.f32.gmra.mrb[0].mxu0 %v396
    %v464 = vpop.f32.mrb[0].mxu0
    %v465 = vadd.f32 %v392, %v464
    %v466 = vpop.f32.mrb[0].mxu0
    %467 = vdwg.mxu0
    %468 = vst [vmem:[#allocation7] sm:$0xff] %v465
    // Predicated region
    $region46: #{tpu_custom_call.1} parent=1 // pred_check
      _
    $region47: #{tpu_custom_call.1} parent=1 // pred_check_branch
      %470 = sbr.rel (0) target = $region49
    $region48: #{tpu_custom_call.1} parent=1 // pred_region
      %s472 = ssub.s32 128, 128
      %473 = vsyncadd [#allocation4], %s472
      %s475 = sshll.u32 [#allocation7], 4
      %s476 = int_to_ptr.vmem [resolvable:$true] %s475
      %478 = dma.vmem_to_hbm [thread:$0]  %s476, 128, %s9, [#allocation4]
    $region49: #{tpu_custom_call.1} parent=1 // pred_fallthru
      _
    // Predicated region
    $region50: #{tpu_custom_call.1} parent=1 // pred_check
      _
    $region51: #{tpu_custom_call.1} parent=1 // pred_check_branch
      %480 = sbr.rel (0) target = $region53
    $region52: #{tpu_custom_call.1} parent=1 // pred_region
      %481 = dma.done [#allocation4], 128
    $region53: #{tpu_custom_call.1} parent=1 // pred_fallthru
      _
    %482 = vsyncpa [#allocation3], 1
    %483 = vsyncpa [#allocation6], 1
    %484 = vsyncpa [#allocation4], 1

</llo_original>
